<compile_context>
chip_gen: v5e
topology: v5e:2x2
jax: 0.10.0
libtpu: 0.0.40
codegen_flags: <defaults>
</compile_context>

<pallas_src>
import jax
import jax.numpy as jnp
from jax.experimental import pallas as pl
from jax.experimental.pallas import tpu as pltpu


def _matmul_kernel(x_ref, wt_ref, o_ref):
    # Grid = (Mp//tm, Np//tn, Kp//tk); k (reduction) is last and "arbitrary".
    # The output block is resident across k, so accumulate directly into it.
    @pl.when(pl.program_id(2) == 0)
    def _():
        o_ref[...] = jnp.zeros_like(o_ref)

    o_ref[...] += jnp.dot(
        x_ref[...], wt_ref[...], preferred_element_type=jnp.float32
    )


def _round_up(v, m):
    return ((v + m - 1) // m) * m


def random_projection(x, w_t, *, tm=None, tn=None, tk=None):
    """Computes x @ W.T given the pre-transposed weight w_t of shape (K, N)."""
    M, K = x.shape
    Kw, N = w_t.shape
    assert K == Kw, "input_features mismatch"

    # Adaptive tile selection (sublane mult-of-8, lane mult-of-128), capped so
    # double-buffered f32 tiles stay ~11 MiB (fits v7x's smaller VMEM too).
    if tm is None:
        tm = 512 if M >= 512 else _round_up(M, 8)
    if tn is None:
        tn = 512 if N >= 512 else _round_up(N, 128)
    if tk is None:
        if K >= 1024:
            tk = 1024
        elif K >= 512:
            tk = 512
        else:
            tk = _round_up(K, 128)

    # Pad to tile multiples (zero K-padding is exact for the matmul).
    Mp, Np, Kp = _round_up(M, tm), _round_up(N, tn), _round_up(K, tk)
    if (Mp, Kp) != (M, K):
        x = jnp.pad(x, ((0, Mp - M), (0, Kp - K)))
    if (Kp, Np) != (K, N):
        w_t = jnp.pad(w_t, ((0, Kp - K), (0, Np - N)))

    grid = (Mp // tm, Np // tn, Kp // tk)

    cost = pl.CostEstimate(
        flops=2 * Mp * Np * Kp,
        transcendentals=0,
        bytes_accessed=4 * (Mp * Kp + Kp * Np + Mp * Np),
    )

    out = pl.pallas_call(
        _matmul_kernel,
        out_shape=jax.ShapeDtypeStruct((Mp, Np), jnp.float32),
        grid_spec=pltpu.PrefetchScalarGridSpec(
            num_scalar_prefetch=0,
            grid=grid,
            in_specs=[
                pl.BlockSpec((tm, tk), lambda i, j, k: (i, k)),  # x tile
                pl.BlockSpec((tk, tn), lambda i, j, k: (k, j)),  # W.T tile
            ],
            out_specs=pl.BlockSpec((tm, tn), lambda i, j, k: (i, j)),
        ),
        compiler_params=pltpu.CompilerParams(
            dimension_semantics=("parallel", "parallel", "arbitrary"),
            vmem_limit_bytes=32 * 1024 * 1024,
        ),
        cost_estimate=cost,
    )(x, w_t)

    if (Mp, Np) != (M, N):
        out = out[:M, :N]
    return out


class RandomProjectionModule:
    """JAX equivalent of the PyTorch module: y = x @ W.T, W ~ N(mean, std)."""

    def __init__(self, input_features, output_features, mean=0.0, std=1.0,
                 key=None):
        if key is None:
            key = jax.random.PRNGKey(0)
        self.input_features = input_features
        self.output_features = output_features
        # Mirrors torch.nn.init.normal_ on a (out_features, in_features) param.
        self.weight = (mean + std * jax.random.normal(
            key, (output_features, input_features), dtype=jnp.float32))
        # One-time transpose of the static random matrix: kernel consumes
        # (K, N) so the inner loop is a canonical (tm,tk)x(tk,tn) MXU matmul.
        self.weight_t = jnp.asarray(self.weight.T)

    def __call__(self, x):
        return random_projection(x, self.weight_t)


if __name__ == "__main__":
    key = jax.random.PRNGKey(0)
    kx, kw = jax.random.split(key)

    batch = 128
    input_features = 256
    output_features = 128

    x = jax.random.normal(kx, (batch, input_features), dtype=jnp.float32)

    mod = RandomProjectionModule(input_features, output_features,
                                 mean=0.0, std=1.0, key=kw)
    y = mod(x)
    y = jax.block_until_ready(y)

    # Correctness check against plain JAX reference.
    y_ref = x @ mod.weight.T
    assert y.shape == (batch, output_features)
    assert jnp.allclose(y, y_ref, atol=1e-4, rtol=1e-4)

    print("KERNEL_OK")
</pallas_src>

<mosaic_0001>
module attributes {stable_mosaic.version = 11 : i64} {
  func.func @_matmul_kernel(%arg0: i32, %arg1: i32, %arg2: i32, %arg3: memref<128x256xf32, #tpu.memory_space<vmem>>, %arg4: memref<256x128xf32, #tpu.memory_space<vmem>>, %arg5: memref<128x128xf32, #tpu.memory_space<vmem>>) attributes {dimension_semantics = [#tpu.dimension_semantics<parallel>, #tpu.dimension_semantics<parallel>, #tpu.dimension_semantics<arbitrary>], iteration_bounds = array<i64: 1, 1, 1>, scalar_prefetch = 0 : i64, scratch_operands = 0 : i64, tpu.core_type = #tpu.core_type<tc>, window_params = [{transform_indices = @transform_0, window_bounds = array<i64: 128, 256>}, {transform_indices = @transform_1, window_bounds = array<i64: 256, 128>}, {transform_indices = @transform_2, window_bounds = array<i64: 128, 128>}]} {
    %c0_i32 = arith.constant 0 : i32
    %0 = arith.cmpi eq, %arg2, %c0_i32 : i32
    %1 = arith.extui %0 : i1 to i32
    %c0_i32_0 = arith.constant 0 : i32
    %2 = arith.cmpi ne, %1, %c0_i32_0 : i32
    scf.if %2 {
      %cst_8 = arith.constant 0.000000e+00 : f32
      %9 = vector.broadcast %cst_8 : f32 to vector<128x128xf32>
      %c0_9 = arith.constant 0 : index
      %c0_10 = arith.constant 0 : index
      %10 = vector.load %arg5[%c0_9, %c0_10] : memref<128x128xf32, #tpu.memory_space<vmem>>, vector<128x128xf32>
      tpu.vector_store %arg5[%c0_9, %c0_10], %9 {strides = array<i32>} : memref<128x128xf32, #tpu.memory_space<vmem>>, vector<128x128xf32>,
    } else {
    }
    %c0 = arith.constant 0 : index
    %c0_1 = arith.constant 0 : index
    %3 = vector.load %arg5[%c0, %c0_1] : memref<128x128xf32, #tpu.memory_space<vmem>>, vector<128x128xf32>
    %c0_2 = arith.constant 0 : index
    %c0_3 = arith.constant 0 : index
    %4 = vector.load %arg3[%c0_2, %c0_3] : memref<128x256xf32, #tpu.memory_space<vmem>>, vector<128x256xf32>
    %c0_4 = arith.constant 0 : index
    %c0_5 = arith.constant 0 : index
    %5 = vector.load %arg4[%c0_4, %c0_5] : memref<256x128xf32, #tpu.memory_space<vmem>>, vector<256x128xf32>
    %cst = arith.constant dense<0.000000e+00> : vector<128x128xf32>
    %6 = tpu.matmul %4, %5, %cst {dimension_numbers = #tpu.dot_dimension_numbers<[1], [0], [0], [1], [0, 0, 1, 1], [], []>} : vector<128x256xf32>, vector<256x128xf32>, vector<128x128xf32> -> vector<128x128xf32>
    %7 = arith.addf %3, %6 : vector<128x128xf32>
    %c0_6 = arith.constant 0 : index
    %c0_7 = arith.constant 0 : index
    %8 = vector.load %arg5[%c0_6, %c0_7] : memref<128x128xf32, #tpu.memory_space<vmem>>, vector<128x128xf32>
    tpu.vector_store %arg5[%c0_6, %c0_7], %7 {strides = array<i32>} : memref<128x128xf32, #tpu.memory_space<vmem>>, vector<128x128xf32>,
    return
  }
  func.func @transform_0(%arg0: i32, %arg1: i32, %arg2: i32) -> (i32, i32) {
    %c0_i32 = arith.constant 0 : i32
    return %arg0, %arg2 : i32, i32
  }
  func.func @transform_1(%arg0: i32, %arg1: i32, %arg2: i32) -> (i32, i32) {
    %c0_i32 = arith.constant 0 : i32
    return %arg2, %arg1 : i32, i32
  }
  func.func @transform_2(%arg0: i32, %arg1: i32, %arg2: i32) -> (i32, i32) {
    %c0_i32 = arith.constant 0 : i32
    return %arg0, %arg1 : i32, i32
  }
}

</mosaic_0001>

<llo_original>
// kernel: tpu_custom_call.1
$region0: #{tpu_custom_call.1}
  #allocation0 [shape = 'u32[]', space=smem, size = 0x4, offset = 0x4, fixed_abs, tag = 'smem constant byte address 0x4 - core index']
  #allocation1 [shape = 'u32[72,128]{1,0:T(1,128)}', space=vmem, size = 0x9000, scoped, tag = 'internal scratch']
  %s0 = inlined_call_operand.hbm [shape: f32[128,256], index: 0, kind: input, shape index: {}]
  %s1 = inlined_call_operand.hbm [shape: f32[256,128], index: 1, kind: input, shape index: {}]
  %s2 = inlined_call_operand.hbm [shape: f32[128,128], index: 2, kind: output, shape index: {}]
  %s3 = sld [smem:[#allocation0]]
  $region30: #{tpu_custom_call.1} parent=0
    _
  %s5 = ssub.s32 1, %s3
  %s6 = scalar_select 0, %s5, %s3
  $region1: #{tpu_custom_call.1} parent=0
    #allocation2 [shape = 'u8[131072]{0}', space=vmem, size = 0x20000, scoped, tag = 'input window, operand 0, single buffered']
    #allocation3 [shape = 's32[1]{0}', space=sflag, size = 0x4, scoped, tag = 'scoped memory for tpu_custom_call.1']
    #allocation4 [shape = 's32[1]{0}', space=sflag, size = 0x4, scoped, tag = 'scoped memory for tpu_custom_call.1']
    #allocation5 [shape = 'u8[131072]{0}', space=vmem, size = 0x20000, scoped, tag = 'input window, operand 1, single buffered']
    #allocation6 [shape = 's32[1]{0}', space=sflag, size = 0x4, scoped, tag = 'scoped memory for tpu_custom_call.1']
    #allocation7 [shape = 'u8[65536]{0}', space=vmem, size = 0x10000, scoped, tag = 'output window, operand 0, single buffered']
    %7 = vsyncpa [#allocation3], 0
    %8 = vsyncpa [#allocation6], 0
    %9 = vsyncpa [#allocation4], 0
    // Predicated region
    $region2: #{tpu_custom_call.1} parent=1 // pred_check
      _
    $region3: #{tpu_custom_call.1} parent=1 // pred_check_branch
      %11 = sbr.rel (0) target = $region5
    $region4: #{tpu_custom_call.1} parent=1 // pred_region
      %13 = vsyncadd [#allocation3], 0
      %s14 = sshll.u32 %s0, 4
      %s15 = int_to_ptr.hbm [resolvable:$true] %s14
      %s16 = sshll.u32 [#allocation2], 4
      %s17 = int_to_ptr.vmem [resolvable:$true] %s16
      %22 = dma.hbm_to_vmem [thread:$0]  %s15, 4096, %s17, [#allocation3], 256, 256, 16
    $region5: #{tpu_custom_call.1} parent=1 // pred_fallthru
      _
    // Predicated region
    $region6: #{tpu_custom_call.1} parent=1 // pred_check
      _
    $region7: #{tpu_custom_call.1} parent=1 // pred_check_branch
      %24 = sbr.rel (0) target = $region9
    $region8: #{tpu_custom_call.1} parent=1 // pred_region
      %26 = vsyncadd [#allocation6], 0
      %s27 = sshll.u32 %s1, 4
      %s28 = int_to_ptr.hbm [resolvable:$true] %s27
      %s29 = sshll.u32 [#allocation5], 4
      %s30 = int_to_ptr.vmem [resolvable:$true] %s29
      %35 = dma.hbm_to_vmem [thread:$0]  %s28, 4096, %s30, [#allocation6], 128, 128, 8
    $region9: #{tpu_custom_call.1} parent=1 // pred_fallthru
      _
    // Predicated region
    $region10: #{tpu_custom_call.1} parent=1 // pred_check
      _
    $region11: #{tpu_custom_call.1} parent=1 // pred_check_branch
      %37 = sbr.rel (0) target = $region13
    $region12: #{tpu_custom_call.1} parent=1 // pred_region
      %39 = dma.done [#allocation3], 4096
    $region13: #{tpu_custom_call.1} parent=1 // pred_fallthru
      _
    // Predicated region
    $region14: #{tpu_custom_call.1} parent=1 // pred_check
      _
    $region15: #{tpu_custom_call.1} parent=1 // pred_check_branch
      %41 = sbr.rel (0) target = $region17
    $region16: #{tpu_custom_call.1} parent=1 // pred_region
      %43 = dma.done [#allocation6], 4096
    $region17: #{tpu_custom_call.1} parent=1 // pred_fallthru
      _
    %p44 = scmp.eq.s32.totalorder 0, 0
    // Predicated region
    $region18: #{tpu_custom_call.1} parent=1 // pred_check
      %p45 = pneg %p44
    $region19: #{tpu_custom_call.1} parent=1 // pred_check_branch
      %47 = sbr.rel (%p45) target = $region21
    $region20: #{tpu_custom_call.1} parent=1 // pred_region
      %48 = vst [vmem:[#allocation7] sm:$0xff] 0.0
      %49 = vst [vmem:[#allocation7 + $0x8] sm:$0xff] 0.0
      %50 = vst [vmem:[#allocation7 + $0x10] sm:$0xff] 0.0
      %51 = vst [vmem:[#allocation7 + $0x18] sm:$0xff] 0.0
      %52 = vst [vmem:[#allocation7 + $0x20] sm:$0xff] 0.0
      %53 = vst [vmem:[#allocation7 + $0x28] sm:$0xff] 0.0
      %54 = vst [vmem:[#allocation7 + $0x30] sm:$0xff] 0.0
      %55 = vst [vmem:[#allocation7 + $0x38] sm:$0xff] 0.0
      %56 = vst [vmem:[#allocation7 + $0x40] sm:$0xff] 0.0
      %57 = vst [vmem:[#allocation7 + $0x48] sm:$0xff] 0.0
      %58 = vst [vmem:[#allocation7 + $0x50] sm:$0xff] 0.0
      %59 = vst [vmem:[#allocation7 + $0x58] sm:$0xff] 0.0
      %60 = vst [vmem:[#allocation7 + $0x60] sm:$0xff] 0.0
      %61 = vst [vmem:[#allocation7 + $0x68] sm:$0xff] 0.0
      %62 = vst [vmem:[#allocation7 + $0x70] sm:$0xff] 0.0
      %63 = vst [vmem:[#allocation7 + $0x78] sm:$0xff] 0.0
    $region21: #{tpu_custom_call.1} parent=1 // pred_fallthru
      _
    %v64 = vld [vmem:[#allocation7] sm:$0xff]
    %v65 = vld [vmem:[#allocation7 + $0x8] sm:$0xff]
    %v66 = vld [vmem:[#allocation7 + $0x10] sm:$0xff]
    %v67 = vld [vmem:[#allocation7 + $0x18] sm:$0xff]
    %v68 = vld [vmem:[#allocation7 + $0x20] sm:$0xff]
    %v69 = vld [vmem:[#allocation7 + $0x28] sm:$0xff]
    %v70 = vld [vmem:[#allocation7 + $0x30] sm:$0xff]
    %v71 = vld [vmem:[#allocation7 + $0x38] sm:$0xff]
    %v72 = vld [vmem:[#allocation7 + $0x40] sm:$0xff]
    %v73 = vld [vmem:[#allocation7 + $0x48] sm:$0xff]
    %v74 = vld [vmem:[#allocation7 + $0x50] sm:$0xff]
    %v75 = vld [vmem:[#allocation7 + $0x58] sm:$0xff]
    %v76 = vld [vmem:[#allocation7 + $0x60] sm:$0xff]
    %v77 = vld [vmem:[#allocation7 + $0x68] sm:$0xff]
    %v78 = vld [vmem:[#allocation7 + $0x70] sm:$0xff]
    %v79 = vld [vmem:[#allocation7 + $0x78] sm:$0xff]
    %v80 = vld [vmem:[#allocation2] sm:$0xff]
    %v81 = vld [vmem:[#allocation2 + $0x8] sm:$0xff]
    %v82 = vld [vmem:[#allocation2 + $0x10] sm:$0xff]
    %v83 = vld [vmem:[#allocation2 + $0x18] sm:$0xff]
    %v84 = vld [vmem:[#allocation2 + $0x20] sm:$0xff]
    %v85 = vld [vmem:[#allocation2 + $0x28] sm:$0xff]
    %v86 = vld [vmem:[#allocation2 + $0x30] sm:$0xff]
    %v87 = vld [vmem:[#allocation2 + $0x38] sm:$0xff]
    %v88 = vld [vmem:[#allocation2 + $0x40] sm:$0xff]
    %v89 = vld [vmem:[#allocation2 + $0x48] sm:$0xff]
    %v90 = vld [vmem:[#allocation2 + $0x50] sm:$0xff]
    %v91 = vld [vmem:[#allocation2 + $0x58] sm:$0xff]
    %v92 = vld [vmem:[#allocation2 + $0x60] sm:$0xff]
    %v93 = vld [vmem:[#allocation2 + $0x68] sm:$0xff]
    %v94 = vld [vmem:[#allocation2 + $0x70] sm:$0xff]
    %v95 = vld [vmem:[#allocation2 + $0x78] sm:$0xff]
    %v96 = vld [vmem:[#allocation2 + $0x80] sm:$0xff]
    %v97 = vld [vmem:[#allocation2 + $0x88] sm:$0xff]
    %v98 = vld [vmem:[#allocation2 + $0x90] sm:$0xff]
    %v99 = vld [vmem:[#allocation2 + $0x98] sm:$0xff]
    %v100 = vld [vmem:[#allocation2 + $0xa0] sm:$0xff]
    %v101 = vld [vmem:[#allocation2 + $0xa8] sm:$0xff]
    %v102 = vld [vmem:[#allocation2 + $0xb0] sm:$0xff]
    %v103 = vld [vmem:[#allocation2 + $0xb8] sm:$0xff]
    %v104 = vld [vmem:[#allocation2 + $0xc0] sm:$0xff]
    %v105 = vld [vmem:[#allocation2 + $0xc8] sm:$0xff]
    %v106 = vld [vmem:[#allocation2 + $0xd0] sm:$0xff]
    %v107 = vld [vmem:[#allocation2 + $0xd8] sm:$0xff]
    %v108 = vld [vmem:[#allocation2 + $0xe0] sm:$0xff]
    %v109 = vld [vmem:[#allocation2 + $0xe8] sm:$0xff]
    %v110 = vld [vmem:[#allocation2 + $0xf0] sm:$0xff]
    %v111 = vld [vmem:[#allocation2 + $0xf8] sm:$0xff]
    %v112 = vld [vmem:[#allocation5] sm:$0xff]
    %v113 = vld [vmem:[#allocation5 + $0x8] sm:$0xff]
    %v114 = vld [vmem:[#allocation5 + $0x10] sm:$0xff]
    %v115 = vld [vmem:[#allocation5 + $0x18] sm:$0xff]
    %v116 = vld [vmem:[#allocation5 + $0x20] sm:$0xff]
    %v117 = vld [vmem:[#allocation5 + $0x28] sm:$0xff]
    %v118 = vld [vmem:[#allocation5 + $0x30] sm:$0xff]
    %v119 = vld [vmem:[#allocation5 + $0x38] sm:$0xff]
    %v120 = vld [vmem:[#allocation5 + $0x40] sm:$0xff]
    %v121 = vld [vmem:[#allocation5 + $0x48] sm:$0xff]
    %v122 = vld [vmem:[#allocation5 + $0x50] sm:$0xff]
    %v123 = vld [vmem:[#allocation5 + $0x58] sm:$0xff]
    %v124 = vld [vmem:[#allocation5 + $0x60] sm:$0xff]
    %v125 = vld [vmem:[#allocation5 + $0x68] sm:$0xff]
    %v126 = vld [vmem:[#allocation5 + $0x70] sm:$0xff]
    %v127 = vld [vmem:[#allocation5 + $0x78] sm:$0xff]
    %v128 = vld [vmem:[#allocation5 + $0x80] sm:$0xff]
    %v129 = vld [vmem:[#allocation5 + $0x88] sm:$0xff]
    %v130 = vld [vmem:[#allocation5 + $0x90] sm:$0xff]
    %v131 = vld [vmem:[#allocation5 + $0x98] sm:$0xff]
    %v132 = vld [vmem:[#allocation5 + $0xa0] sm:$0xff]
    %v133 = vld [vmem:[#allocation5 + $0xa8] sm:$0xff]
    %v134 = vld [vmem:[#allocation5 + $0xb0] sm:$0xff]
    %v135 = vld [vmem:[#allocation5 + $0xb8] sm:$0xff]
    %v136 = vld [vmem:[#allocation5 + $0xc0] sm:$0xff]
    %v137 = vld [vmem:[#allocation5 + $0xc8] sm:$0xff]
    %v138 = vld [vmem:[#allocation5 + $0xd0] sm:$0xff]
    %v139 = vld [vmem:[#allocation5 + $0xd8] sm:$0xff]
    %v140 = vld [vmem:[#allocation5 + $0xe0] sm:$0xff]
    %v141 = vld [vmem:[#allocation5 + $0xe8] sm:$0xff]
    %v142 = vld [vmem:[#allocation5 + $0xf0] sm:$0xff]
    %v143 = vld [vmem:[#allocation5 + $0xf8] sm:$0xff]
    %144 = vmatpush.msra.mxu0 %v127
    %145 = vmatpush.msra.mxu0 %v126
    %146 = vmatpush.msra.mxu0 %v125
    %147 = vmatpush.msra.mxu0 %v124
    %148 = vmatpush.msra.mxu0 %v123
    %149 = vmatpush.msra.mxu0 %v122
    %150 = vmatpush.msra.mxu0 %v121
    %151 = vmatpush.msra.mxu0 %v120
    %152 = vmatpush.msra.mxu0 %v119
    %153 = vmatpush.msra.mxu0 %v118
    %154 = vmatpush.msra.mxu0 %v117
    %155 = vmatpush.msra.mxu0 %v116
    %156 = vmatpush.msra.mxu0 %v115
    %157 = vmatpush.msra.mxu0 %v114
    %158 = vmatpush.msra.mxu0 %v113
    %159 = vmatpush.msra.mxu0 %v112
    %160 = vmatmul.f32.gmra.mxu0 %v80
    %v161 = vpop.f32.mrf.mxu0
    %v162 = vadd.f32 0.0, %v161
    %163 = vmatmul.f32.gmra.mxu0 %v82
    %v164 = vpop.f32.mrf.mxu0
    %v165 = vadd.f32 0.0, %v164
    %166 = vmatmul.f32.gmra.mxu0 %v84
    %v167 = vpop.f32.mrf.mxu0
    %v168 = vadd.f32 0.0, %v167
    %169 = vmatmul.f32.gmra.mxu0 %v86
    %v170 = vpop.f32.mrf.mxu0
    %v171 = vadd.f32 0.0, %v170
    %172 = vmatmul.f32.gmra.mxu0 %v88
    %v173 = vpop.f32.mrf.mxu0
    %v174 = vadd.f32 0.0, %v173
    %175 = vmatmul.f32.gmra.mxu0 %v90
    %v176 = vpop.f32.mrf.mxu0
    %v177 = vadd.f32 0.0, %v176
    %178 = vmatmul.f32.gmra.mxu0 %v92
    %v179 = vpop.f32.mrf.mxu0
    %v180 = vadd.f32 0.0, %v179
    %181 = vmatmul.f32.gmra.mxu0 %v94
    %v182 = vpop.f32.mrf.mxu0
    %v183 = vadd.f32 0.0, %v182
    %184 = vmatmul.f32.gmra.mxu0 %v96
    %v185 = vpop.f32.mrf.mxu0
    %v186 = vadd.f32 0.0, %v185
    %187 = vmatmul.f32.gmra.mxu0 %v98
    %v188 = vpop.f32.mrf.mxu0
    %v189 = vadd.f32 0.0, %v188
    %190 = vmatmul.f32.gmra.mxu0 %v100
    %v191 = vpop.f32.mrf.mxu0
    %v192 = vadd.f32 0.0, %v191
    %193 = vmatmul.f32.gmra.mxu0 %v102
    %v194 = vpop.f32.mrf.mxu0
    %v195 = vadd.f32 0.0, %v194
    %196 = vmatmul.f32.gmra.mxu0 %v104
    %v197 = vpop.f32.mrf.mxu0
    %v198 = vadd.f32 0.0, %v197
    %199 = vmatmul.f32.gmra.mxu0 %v106
    %v200 = vpop.f32.mrf.mxu0
    %v201 = vadd.f32 0.0, %v200
    %202 = vmatmul.f32.gmra.mxu0 %v108
    %v203 = vpop.f32.mrf.mxu0
    %v204 = vadd.f32 0.0, %v203
    %205 = vmatmul.f32.gmra.mxu0 %v110
    %v206 = vpop.f32.mrf.mxu0
    %v207 = vadd.f32 0.0, %v206
    %208 = vdwg.mxu0
    %209 = vmatpush.msra.mxu0 %v143
    %210 = vmatpush.msra.mxu0 %v142
    %211 = vmatpush.msra.mxu0 %v141
    %212 = vmatpush.msra.mxu0 %v140
    %213 = vmatpush.msra.mxu0 %v139
    %214 = vmatpush.msra.mxu0 %v138
    %215 = vmatpush.msra.mxu0 %v137
    %216 = vmatpush.msra.mxu0 %v136
    %217 = vmatpush.msra.mxu0 %v135
    %218 = vmatpush.msra.mxu0 %v134
    %219 = vmatpush.msra.mxu0 %v133
    %220 = vmatpush.msra.mxu0 %v132
    %221 = vmatpush.msra.mxu0 %v131
    %222 = vmatpush.msra.mxu0 %v130
    %223 = vmatpush.msra.mxu0 %v129
    %224 = vmatpush.msra.mxu0 %v128
    %225 = vmatmul.f32.gmra.mxu0 %v81
    %v226 = vpop.f32.mrf.mxu0
    %v227 = vadd.f32 %v162, %v226
    %228 = vmatmul.f32.gmra.mxu0 %v83
    %v229 = vpop.f32.mrf.mxu0
    %v230 = vadd.f32 %v165, %v229
    %231 = vmatmul.f32.gmra.mxu0 %v85
    %v232 = vpop.f32.mrf.mxu0
    %v233 = vadd.f32 %v168, %v232
    %234 = vmatmul.f32.gmra.mxu0 %v87
    %v235 = vpop.f32.mrf.mxu0
    %v236 = vadd.f32 %v171, %v235
    %237 = vmatmul.f32.gmra.mxu0 %v89
    %v238 = vpop.f32.mrf.mxu0
    %v239 = vadd.f32 %v174, %v238
    %240 = vmatmul.f32.gmra.mxu0 %v91
    %v241 = vpop.f32.mrf.mxu0
    %v242 = vadd.f32 %v177, %v241
    %243 = vmatmul.f32.gmra.mxu0 %v93
    %v244 = vpop.f32.mrf.mxu0
    %v245 = vadd.f32 %v180, %v244
    %246 = vmatmul.f32.gmra.mxu0 %v95
    %v247 = vpop.f32.mrf.mxu0
    %v248 = vadd.f32 %v183, %v247
    %249 = vmatmul.f32.gmra.mxu0 %v97
    %v250 = vpop.f32.mrf.mxu0
    %v251 = vadd.f32 %v186, %v250
    %252 = vmatmul.f32.gmra.mxu0 %v99
    %v253 = vpop.f32.mrf.mxu0
    %v254 = vadd.f32 %v189, %v253
    %255 = vmatmul.f32.gmra.mxu0 %v101
    %v256 = vpop.f32.mrf.mxu0
    %v257 = vadd.f32 %v192, %v256
    %258 = vmatmul.f32.gmra.mxu0 %v103
    %v259 = vpop.f32.mrf.mxu0
    %v260 = vadd.f32 %v195, %v259
    %261 = vmatmul.f32.gmra.mxu0 %v105
    %v262 = vpop.f32.mrf.mxu0
    %v263 = vadd.f32 %v198, %v262
    %264 = vmatmul.f32.gmra.mxu0 %v107
    %v265 = vpop.f32.mrf.mxu0
    %v266 = vadd.f32 %v201, %v265
    %267 = vmatmul.f32.gmra.mxu0 %v109
    %v268 = vpop.f32.mrf.mxu0
    %v269 = vadd.f32 %v204, %v268
    %270 = vmatmul.f32.gmra.mxu0 %v111
    %v271 = vpop.f32.mrf.mxu0
    %v272 = vadd.f32 %v207, %v271
    %273 = vdwg.mxu0
    %v274 = vadd.f32 %v64, %v227
    %v275 = vadd.f32 %v65, %v230
    %v276 = vadd.f32 %v66, %v233
    %v277 = vadd.f32 %v67, %v236
    %v278 = vadd.f32 %v68, %v239
    %v279 = vadd.f32 %v69, %v242
    %v280 = vadd.f32 %v70, %v245
    %v281 = vadd.f32 %v71, %v248
    %v282 = vadd.f32 %v72, %v251
    %v283 = vadd.f32 %v73, %v254
    %v284 = vadd.f32 %v74, %v257
    %v285 = vadd.f32 %v75, %v260
    %v286 = vadd.f32 %v76, %v263
    %v287 = vadd.f32 %v77, %v266
    %v288 = vadd.f32 %v78, %v269
    %v289 = vadd.f32 %v79, %v272
    %290 = vst [vmem:[#allocation7] sm:$0xff] %v274
    %291 = vst [vmem:[#allocation7 + $0x8] sm:$0xff] %v275
    %292 = vst [vmem:[#allocation7 + $0x10] sm:$0xff] %v276
    %293 = vst [vmem:[#allocation7 + $0x18] sm:$0xff] %v277
    %294 = vst [vmem:[#allocation7 + $0x20] sm:$0xff] %v278
    %295 = vst [vmem:[#allocation7 + $0x28] sm:$0xff] %v279
    %296 = vst [vmem:[#allocation7 + $0x30] sm:$0xff] %v280
    %297 = vst [vmem:[#allocation7 + $0x38] sm:$0xff] %v281
    %298 = vst [vmem:[#allocation7 + $0x40] sm:$0xff] %v282
    %299 = vst [vmem:[#allocation7 + $0x48] sm:$0xff] %v283
    %300 = vst [vmem:[#allocation7 + $0x50] sm:$0xff] %v284
    %301 = vst [vmem:[#allocation7 + $0x58] sm:$0xff] %v285
    %302 = vst [vmem:[#allocation7 + $0x60] sm:$0xff] %v286
    %303 = vst [vmem:[#allocation7 + $0x68] sm:$0xff] %v287
    %304 = vst [vmem:[#allocation7 + $0x70] sm:$0xff] %v288
    %305 = vst [vmem:[#allocation7 + $0x78] sm:$0xff] %v289
    // Predicated region
    $region22: #{tpu_custom_call.1} parent=1 // pred_check
      _
    $region23: #{tpu_custom_call.1} parent=1 // pred_check_branch
      %307 = sbr.rel (0) target = $region25
    $region24: #{tpu_custom_call.1} parent=1 // pred_region
      %309 = vsyncadd [#allocation4], 0
      %s310 = sshll.u32 [#allocation7], 4
      %s311 = int_to_ptr.vmem [resolvable:$true] %s310
      %s312 = sshll.u32 %s2, 4
      %s313 = int_to_ptr.hbm [resolvable:$true] %s312
      %318 = dma.vmem_to_hbm [thread:$0]  %s311, 2048, %s313, [#allocation4], 128, 128, 8
    $region25: #{tpu_custom_call.1} parent=1 // pred_fallthru
      _
    // Predicated region
    $region26: #{tpu_custom_call.1} parent=1 // pred_check
      _
    $region27: #{tpu_custom_call.1} parent=1 // pred_check_branch
      %320 = sbr.rel (0) target = $region29
    $region28: #{tpu_custom_call.1} parent=1 // pred_region
      %322 = dma.done [#allocation4], 2048
    $region29: #{tpu_custom_call.1} parent=1 // pred_fallthru
      _
    %323 = vsyncpa [#allocation3], 1
    %324 = vsyncpa [#allocation6], 1
    %325 = vsyncpa [#allocation4], 1

</llo_original>
